<compile_context>
chip_gen: v5e
topology: v5e:2x2
jax: 0.10.0
libtpu: 0.0.40
codegen_flags: <defaults>
</compile_context>

<pallas_src>
import functools

import jax
import jax.numpy as jnp
from jax.experimental import pallas as pl
from jax.experimental.pallas import tpu as pltpu


def _round_up(n, m):
    return ((n + m - 1) // m) * m


def _vmem_limit(est_bytes):
    # Explicit scoped-VMEM limit: generous headroom, but stay well under the
    # 64 MiB physical VMEM of v7x (128 MiB on v5e/v6e).
    return int(min(max(2 * est_bytes, 32 << 20), 40 << 20))


# --------------------- fused single-program path (small/medium B) ---------------------

def _fused_kernel(x_ref, w1_ref, gamma_ref, beta_ref, w2_ref, b2_ref, o_ref, *,
                  inv_b, mxu_dtype):
    x = x_ref[...]
    if mxu_dtype is not None:
        x = x.astype(mxu_dtype)          # in-kernel VPU cast (free under MXU/DMA)

    # Linear1 (b1 omitted: training-mode BN mean subtraction cancels it exactly).
    h = jnp.dot(x, w1_ref[...], preferred_element_type=jnp.float32)

    # One-pass batch stats.  Zero-padded rows contribute nothing; inv_b = 1/B_true.
    # TODO(synk): one-pass E[h^2]-E[h]^2 can cancel badly if |mean| >> std.
    sum_h = jnp.sum(h, axis=0, keepdims=True)
    sum_h2 = jnp.sum(h * h, axis=0, keepdims=True)
    mean = sum_h * inv_b
    var = jnp.maximum(sum_h2 * inv_b - mean * mean, 0.0)

    # Fold gamma into the rsqrt scale -> one fused multiply-add per element.
    scale = gamma_ref[...] * jax.lax.rsqrt(var + 1e-5)       # [1, half]
    shift = beta_ref[...] - mean * scale                     # [1, half]
    h = jnp.maximum(h * scale + shift, 0.0)                  # BN + ReLU

    out = jnp.dot(h.astype(w2_ref.dtype), w2_ref[...],
                  preferred_element_type=jnp.float32) + b2_ref[...]
    o_ref[...] = out.astype(o_ref.dtype)                     # Dropout(p=0) == id


def _pooler_head_fused(x_flat, w1, gamma, beta, w2, b2, *, mxu_dtype, vmem_limit):
    B, pn = x_flat.shape
    half = w1.shape[1]
    dim = w2.shape[1]

    b_pad = _round_up(max(B, 8), 8)                          # sublane-aligned rows
    if b_pad != B:
        x_flat = jnp.pad(x_flat, ((0, b_pad - B), (0, 0)))

    full = lambda shape: pl.BlockSpec(shape, lambda: tuple(0 for _ in shape))
    out = pl.pallas_call(
        functools.partial(_fused_kernel, inv_b=1.0 / B, mxu_dtype=mxu_dtype),
        out_shape=jax.ShapeDtypeStruct((b_pad, dim), jnp.float32),
        grid=(),
        in_specs=[
            full((b_pad, pn)),     # x
            full((pn, half)),      # W1 (in, out)
            full((1, half)),       # gamma
            full((1, half)),       # beta
            full((half, dim)),     # W2 (in, out)
            full((1, dim)),        # b2
        ],
        out_specs=full((b_pad, dim)),
        compiler_params=pltpu.CompilerParams(vmem_limit_bytes=vmem_limit),
    )(x_flat, w1, gamma, beta, w2, b2)
    return out[:B]


# ----------- two-sweep single kernel: h resident in VMEM scratch (large B) -----------

def _two_sweep_kernel(x_ref, w1_ref, gamma_ref, beta_ref, w2_ref, b2_ref, o_ref,
                      h_scr, sum_scr, sumsq_scr, scale_scr, shift_scr, *,
                      inv_b, block_b, mxu_dtype):
    s = pl.program_id(0)                       # 0: Linear1+stats, 1: BN+ReLU+Linear2
    i = pl.program_id(1)                       # batch-tile index
    row0 = pl.multiple_of(i * block_b, block_b)

    @pl.when(s == 0)
    def _linear1_and_stats():
        @pl.when(i == 0)
        def _init():
            sum_scr[...] = jnp.zeros_like(sum_scr)
            sumsq_scr[...] = jnp.zeros_like(sumsq_scr)

        x = x_ref[...]
        if mxu_dtype is not None:
            x = x.astype(mxu_dtype)
        h = jnp.dot(x, w1_ref[...], preferred_element_type=jnp.float32)
        h_scr[pl.ds(row0, block_b), :] = h                    # stays in VMEM
        sum_scr[...] += jnp.sum(h, axis=0, keepdims=True)
        sumsq_scr[...] += jnp.sum(h * h, axis=0, keepdims=True)

    @pl.when(s == 1)
    def _bn_relu_linear2():
        @pl.when(i == 0)
        def _finalize_stats():
            mean = sum_scr[...] * inv_b
            var = jnp.maximum(sumsq_scr[...] * inv_b - mean * mean, 0.0)
            scale = gamma_ref[...] * jax.lax.rsqrt(var + 1e-5)
            scale_scr[...] = scale
            shift_scr[...] = beta_ref[...] - mean * scale

        h = h_scr[pl.ds(row0, block_b), :]
        h = jnp.maximum(h * scale_scr[...] + shift_scr[...], 0.0)
        out = jnp.dot(h.astype(w2_ref.dtype), w2_ref[...],
                      preferred_element_type=jnp.float32) + b2_ref[...]
        o_ref[...] = out.astype(o_ref.dtype)


def _pooler_head_two_sweep(x_flat, w1, gamma, beta, w2, b2, *, block_b,
                           mxu_dtype, vmem_limit):
    B, pn = x_flat.shape
    half = w1.shape[1]
    dim = w2.shape[1]

    block_b = max(8, _round_up(block_b, 8))
    b_pad = _round_up(B, block_b)
    if b_pad != B:
        x_flat = jnp.pad(x_flat, ((0, b_pad - B), (0, 0)))
    nb = b_pad // block_b

    out = pl.pallas_call(
        functools.partial(_two_sweep_kernel, inv_b=1.0 / B, block_b=block_b,
                          mxu_dtype=mxu_dtype),
        out_shape=jax.ShapeDtypeStruct((b_pad, dim), jnp.float32),
        grid=(2, nb),
        in_specs=[
            # x: streamed per tile in sweep 0; pinned to the last tile in
            # sweep 1 so no re-DMA ever happens.
            pl.BlockSpec((block_b, pn),
                         lambda s, i: ((1 - s) * i + s * (nb - 1), 0)),
            pl.BlockSpec((pn, half), lambda s, i: (0, 0)),    # resident W1
            pl.BlockSpec((1, half), lambda s, i: (0, 0)),     # gamma
            pl.BlockSpec((1, half), lambda s, i: (0, 0)),     # beta
            pl.BlockSpec((half, dim), lambda s, i: (0, 0)),   # resident W2
            pl.BlockSpec((1, dim), lambda s, i: (0, 0)),      # b2
        ],
        # Output pinned to block 0 during sweep 0 (no write / no writeback),
        # then per-tile during sweep 1.
        out_specs=pl.BlockSpec((block_b, dim), lambda s, i: (s * i, 0)),
        scratch_shapes=[
            pltpu.VMEM((b_pad, half), jnp.float32),   # h (never touches HBM)
            pltpu.VMEM((1, half), jnp.float32),       # sum
            pltpu.VMEM((1, half), jnp.float32),       # sumsq
            pltpu.VMEM((1, half), jnp.float32),       # scale
            pltpu.VMEM((1, half), jnp.float32),       # shift
        ],
        compiler_params=pltpu.CompilerParams(
            dimension_semantics=("arbitrary", "arbitrary"),
            vmem_limit_bytes=vmem_limit),
    )(x_flat, w1, gamma, beta, w2, b2)
    return out[:B]


# -------------- huge-batch fallback: two-phase HBM pipeline (bf16 h) --------------

def _linear1_partials_kernel(x_ref, w1_ref, h_ref, sum_ref, sumsq_ref, *, mxu_dtype):
    x = x_ref[...]
    if mxu_dtype is not None:
        x = x.astype(mxu_dtype)
    h = jnp.dot(x, w1_ref[...], preferred_element_type=jnp.float32)
    h_ref[...] = h.astype(h_ref.dtype)                        # bf16 intermediate
    # Per-tile partial stats (f32) -> both phases are megacore-parallel on v7x.
    sum_ref[...] = jnp.sum(h, axis=0, keepdims=True).reshape(sum_ref.shape)
    sumsq_ref[...] = jnp.sum(h * h, axis=0, keepdims=True).reshape(sumsq_ref.shape)


def _bn_relu_linear2_kernel(h_ref, scale_ref, shift_ref, w2_ref, b2_ref, o_ref):
    h = h_ref[...].astype(jnp.float32)
    h = jnp.maximum(h * scale_ref[...] + shift_ref[...], 0.0)
    out = jnp.dot(h.astype(w2_ref.dtype), w2_ref[...],
                  preferred_element_type=jnp.float32) + b2_ref[...]
    o_ref[...] = out.astype(o_ref.dtype)


def _pooler_head_tiled(x_flat, w1, gamma, beta, w2, b2, *, block_b, mxu_dtype,
                       vmem_limit):
    B, pn = x_flat.shape
    half = w1.shape[1]
    dim = w2.shape[1]

    block_b = max(8, _round_up(block_b, 8))
    b_pad = _round_up(B, block_b)
    if b_pad != B:
        x_flat = jnp.pad(x_flat, ((0, b_pad - B), (0, 0)))
    nb = b_pad // block_b

    # Phase 1: Linear1 per batch tile (resident W1) + per-tile partial stats.
    h, sum_p, sumsq_p = pl.pallas_call(
        functools.partial(_linear1_partials_kernel, mxu_dtype=mxu_dtype),
        out_shape=(jax.ShapeDtypeStruct((b_pad, half), jnp.bfloat16),
                   jax.ShapeDtypeStruct((nb, 1, half), jnp.float32),
                   jax.ShapeDtypeStruct((nb, 1, half), jnp.float32)),
        grid=(nb,),
        in_specs=[
            pl.BlockSpec((block_b, pn), lambda i: (i, 0)),
            pl.BlockSpec((pn, half), lambda i: (0, 0)),       # resident weight
        ],
        out_specs=(
            pl.BlockSpec((block_b, half), lambda i: (i, 0)),
            pl.BlockSpec((1, 1, half), lambda i: (i, 0, 0)),
            pl.BlockSpec((1, 1, half), lambda i: (i, 0, 0)),
        ),
        compiler_params=pltpu.CompilerParams(
            dimension_semantics=("parallel",),
            vmem_limit_bytes=vmem_limit),
    )(x_flat, w1)

    # Tiny [1, half] BN-parameter math in plain JAX (f32 partials, TRUE batch B).
    sum_h = jnp.sum(sum_p[:, 0, :], axis=0, keepdims=True)
    sum_h2 = jnp.sum(sumsq_p[:, 0, :], axis=0, keepdims=True)
    mean = sum_h / B
    var = jnp.maximum(sum_h2 / B - mean * mean, 0.0)
    scale = gamma * jax.lax.rsqrt(var + 1e-5)
    shift = beta - mean * scale

    # Phase 2: normalize + ReLU + Linear2 (resident W2), "parallel" tiles.
    out = pl.pallas_call(
        _bn_relu_linear2_kernel,
        out_shape=jax.ShapeDtypeStruct((b_pad, dim), jnp.float32),
        grid=(nb,),
        in_specs=[
            pl.BlockSpec((block_b, half), lambda i: (i, 0)),
            pl.BlockSpec((1, half), lambda i: (0, 0)),
            pl.BlockSpec((1, half), lambda i: (0, 0)),
            pl.BlockSpec((half, dim), lambda i: (0, 0)),
            pl.BlockSpec((1, dim), lambda i: (0, 0)),
        ],
        out_specs=pl.BlockSpec((block_b, dim), lambda i: (i, 0)),
        compiler_params=pltpu.CompilerParams(
            dimension_semantics=("parallel",),
            vmem_limit_bytes=vmem_limit),
    )(h, scale, shift, w2, b2)
    return out[:B]


# --------------------------------- dispatcher ---------------------------------

def pooler_head_forward(x, w1, b1, gamma, beta, w2, b2, *, block_b=512,
                        mxu_dtype=None, vmem_budget_bytes=24 << 20):
    """x: [B, seq_len, d_model] float32 -> [B, 128] float32.

    b1 is accepted for parameter parity with nn.Linear but never used: under
    training-mode BatchNorm1d the per-feature mean subtraction cancels the
    bias exactly.  mxu_dtype=jnp.bfloat16 enables reduced-precision MXU inputs
    on v6e/v7x (keep None on v5e / for exact f32 numerics).
    """
    del b1  # cancelled by training-mode BatchNorm mean subtraction
    B = x.shape[0]
    pn = x.shape[-2] * x.shape[-1]
    half = w1.shape[1]
    dim = w2.shape[1]
    x_flat = x.reshape(B, pn)                                 # Flatten(start_dim=-2)

    if mxu_dtype is not None:
        # Only the (small) weights are pre-cast; x is DMA'd in its native dtype
        # and cast on the VPU inside the kernel, right before the MXU dot.
        # NOTE: fp8 is not a drop-in on v7x; keep bf16 as the reduced option.
        w1 = w1.astype(mxu_dtype)
        w2 = w2.astype(mxu_dtype)

    weight_bytes = (pn * half + half * dim) * 4 + 16 * (half + dim) * 4

    # 1) Single ungridded fused kernel whenever x + h-temporaries + output +
    #    weights fit the VMEM budget (the common case).
    b_pad8 = _round_up(max(B, 8), 8)
    fused_bytes = b_pad8 * (pn + 3 * half + dim) * 4 + weight_bytes
    if fused_bytes <= vmem_budget_bytes:
        return _pooler_head_fused(x_flat, w1, gamma, beta, w2, b2,
                                  mxu_dtype=mxu_dtype,
                                  vmem_limit=_vmem_limit(fused_bytes))

    # 2) Two-sweep single kernel: x streamed in batch tiles, h resident in a
    #    VMEM scratch (never touches HBM).
    bb = max(8, _round_up(block_b, 8))
    b_pad = _round_up(B, bb)
    sweep_bytes = (b_pad * half * 4 + 2 * bb * (pn + dim) * 4
                   + 3 * bb * half * 4 + weight_bytes)
    if sweep_bytes <= vmem_budget_bytes:
        return _pooler_head_two_sweep(x_flat, w1, gamma, beta, w2, b2,
                                      block_b=bb, mxu_dtype=mxu_dtype,
                                      vmem_limit=_vmem_limit(sweep_bytes))

    # 3) Huge batches: two-phase HBM pipeline, bf16 intermediate, parallel
    #    per-tile partial statistics (megacore-friendly).
    tiled_bytes = 2 * bb * (pn + half + dim) * 4 + weight_bytes
    return _pooler_head_tiled(x_flat, w1, gamma, beta, w2, b2, block_b=bb,
                              mxu_dtype=mxu_dtype,
                              vmem_limit=_vmem_limit(tiled_bytes))


def reference_forward(x, w1, b1, gamma, beta, w2, b2):
    """Pure-JAX reference matching the PyTorch module (training-mode BN)."""
    B = x.shape[0]
    h = x.reshape(B, -1) @ w1 + b1
    mean = h.mean(axis=0, keepdims=True)
    var = ((h - mean) ** 2).mean(axis=0, keepdims=True)
    h = (h - mean) / jnp.sqrt(var + 1e-5) * gamma + beta
    h = jnp.maximum(h, 0.0)
    return h @ w2 + b2


if __name__ == "__main__":
    key = jax.random.PRNGKey(0)
    k_x1, k_p1, k_x2, k_p2 = jax.random.split(key, 4)

    seq_len, d_model = 8, 32
    pn = seq_len * d_model           # 256
    half = pn // 2                   # 128
    dim = 128

    def make_params(k):
        kw1, kb1, kw2, kb2 = jax.random.split(k, 4)
        bound1 = 1.0 / (pn ** 0.5)
        w1 = jax.random.uniform(kw1, (pn, half), jnp.float32, -bound1, bound1)
        b1 = jax.random.uniform(kb1, (1, half), jnp.float32, -bound1, bound1)
        bound2 = 1.0 / (half ** 0.5)
        w2 = jax.random.uniform(kw2, (half, dim), jnp.float32, -bound2, bound2)
        b2 = jax.random.uniform(kb2, (1, dim), jnp.float32, -bound2, bound2)
        gamma = jnp.ones((1, half), jnp.float32)
        beta = jnp.zeros((1, half), jnp.float32)
        return w1, b1, gamma, beta, w2, b2

    # --- Test 1: tiny batch -> single fused program (dispatcher, VMEM-gated) ---
    B1 = 4
    x1 = jax.random.normal(k_x1, (B1, seq_len, d_model), dtype=jnp.float32)
    p1 = make_params(k_p1)
    out1 = jax.block_until_ready(pooler_head_forward(x1, *p1))
    ref1 = reference_forward(x1, *p1)
    assert out1.shape == (B1, dim)
    assert jnp.allclose(out1, ref1, atol=1e-3, rtol=1e-3), "fused path mismatch"

    # --- Test 2: two-sweep kernel (h resident in VMEM scratch), padded batch ---
    B2 = 60
    x2 = jax.random.normal(k_x2, (B2, seq_len, d_model), dtype=jnp.float32)
    p2 = make_params(k_p2)
    w1_, b1_, gamma_, beta_, w2_, b2_ = p2
    out2 = jax.block_until_ready(
        _pooler_head_two_sweep(x2.reshape(B2, -1), w1_, gamma_, beta_, w2_, b2_,
                               block_b=16, mxu_dtype=None, vmem_limit=32 << 20))
    ref2 = reference_forward(x2, *p2)
    assert out2.shape == (B2, dim)
    assert jnp.allclose(out2, ref2, atol=1e-3, rtol=1e-3), "two-sweep path mismatch"

    # --- Test 3: huge-batch HBM fallback (bf16 intermediate, parallel partials) ---
    out3 = jax.block_until_ready(
        _pooler_head_tiled(x2.reshape(B2, -1), w1_, gamma_, beta_, w2_, b2_,
                           block_b=16, mxu_dtype=None, vmem_limit=32 << 20))
    assert out3.shape == (B2, dim)
    assert jnp.allclose(out3, ref2, atol=3e-2, rtol=3e-2), "tiled path mismatch"

    # --- Test 4: optional bf16 MXU inputs (in-kernel cast), looser tolerance ---
    out4 = jax.block_until_ready(
        pooler_head_forward(x1, *p1, mxu_dtype=jnp.bfloat16))
    assert out4.shape == (B1, dim)
    assert jnp.allclose(out4, ref1, atol=5e-2, rtol=5e-2), "bf16 path mismatch"

    print("KERNEL_OK")
</pallas_src>

<mosaic_0001>
module attributes {stable_mosaic.version = 11 : i64} {
  func.func @_fused_kernel(%arg0: memref<8x256xf32, #tpu.memory_space<vmem>>, %arg1: memref<256x128xf32, #tpu.memory_space<vmem>>, %arg2: memref<1x128xf32, #tpu.memory_space<vmem>>, %arg3: memref<1x128xf32, #tpu.memory_space<vmem>>, %arg4: memref<128x128xf32, #tpu.memory_space<vmem>>, %arg5: memref<1x128xf32, #tpu.memory_space<vmem>>, %arg6: memref<8x128xf32, #tpu.memory_space<vmem>>) attributes {dimension_semantics = [], scalar_prefetch = 0 : i64, scratch_operands = 0 : i64, tpu.core_type = #tpu.core_type<tc>} {
    %c0 = arith.constant 0 : index
    %c0_0 = arith.constant 0 : index
    %0 = vector.load %arg0[%c0, %c0_0] : memref<8x256xf32, #tpu.memory_space<vmem>>, vector<8x256xf32>
    %c0_1 = arith.constant 0 : index
    %c0_2 = arith.constant 0 : index
    %1 = vector.load %arg1[%c0_1, %c0_2] : memref<256x128xf32, #tpu.memory_space<vmem>>, vector<256x128xf32>
    %cst = arith.constant dense<0.000000e+00> : vector<8x128xf32>
    %2 = tpu.matmul %0, %1, %cst {dimension_numbers = #tpu.dot_dimension_numbers<[1], [0], [0], [1], [0, 0, 1, 1], [], []>} : vector<8x256xf32>, vector<256x128xf32>, vector<8x128xf32> -> vector<8x128xf32>
    %cst_3 = arith.constant dense<0.000000e+00> : vector<128xf32>
    %3 = vector.multi_reduction <add>, %2, %cst_3 [0] : vector<8x128xf32> to vector<128xf32>
    %4 = vector.shape_cast %3 : vector<128xf32> to vector<1x128xf32>
    %5 = arith.mulf %2, %2 : vector<8x128xf32>
    %cst_4 = arith.constant dense<0.000000e+00> : vector<128xf32>
    %6 = vector.multi_reduction <add>, %5, %cst_4 [0] : vector<8x128xf32> to vector<128xf32>
    %7 = vector.shape_cast %6 : vector<128xf32> to vector<1x128xf32>
    %cst_5 = arith.constant 2.500000e-01 : f32
    %8 = vector.broadcast %cst_5 : f32 to vector<1x128xf32>
    %9 = arith.mulf %4, %8 : vector<1x128xf32>
    %cst_6 = arith.constant 2.500000e-01 : f32
    %10 = vector.broadcast %cst_6 : f32 to vector<1x128xf32>
    %11 = arith.mulf %7, %10 : vector<1x128xf32>
    %12 = arith.mulf %9, %9 : vector<1x128xf32>
    %13 = arith.subf %11, %12 : vector<1x128xf32>
    %cst_7 = arith.constant 0.000000e+00 : f32
    %14 = vector.broadcast %cst_7 : f32 to vector<1x128xf32>
    %15 = arith.maximumf %13, %14 : vector<1x128xf32>
    %c0_8 = arith.constant 0 : index
    %c0_9 = arith.constant 0 : index
    %16 = vector.load %arg2[%c0_8, %c0_9] : memref<1x128xf32, #tpu.memory_space<vmem>>, vector<1x128xf32>
    %cst_10 = arith.constant 9.99999974E-6 : f32
    %17 = vector.broadcast %cst_10 : f32 to vector<1x128xf32>
    %18 = arith.addf %15, %17 : vector<1x128xf32>
    %19 = math.rsqrt %18 : vector<1x128xf32>
    %20 = arith.mulf %16, %19 : vector<1x128xf32>
    %c0_11 = arith.constant 0 : index
    %c0_12 = arith.constant 0 : index
    %21 = vector.load %arg3[%c0_11, %c0_12] : memref<1x128xf32, #tpu.memory_space<vmem>>, vector<1x128xf32>
    %22 = arith.mulf %9, %20 : vector<1x128xf32>
    %23 = arith.subf %21, %22 : vector<1x128xf32>
    %24 = vector.broadcast %20 : vector<1x128xf32> to vector<8x128xf32>
    %25 = arith.mulf %2, %24 : vector<8x128xf32>
    %26 = vector.broadcast %23 : vector<1x128xf32> to vector<8x128xf32>
    %27 = arith.addf %25, %26 : vector<8x128xf32>
    %cst_13 = arith.constant 0.000000e+00 : f32
    %28 = vector.broadcast %cst_13 : f32 to vector<8x128xf32>
    %29 = arith.maximumf %27, %28 : vector<8x128xf32>
    %c0_14 = arith.constant 0 : index
    %c0_15 = arith.constant 0 : index
    %30 = vector.load %arg4[%c0_14, %c0_15] : memref<128x128xf32, #tpu.memory_space<vmem>>, vector<128x128xf32>
    %cst_16 = arith.constant dense<0.000000e+00> : vector<8x128xf32>
    %31 = tpu.matmul %29, %30, %cst_16 {dimension_numbers = #tpu.dot_dimension_numbers<[1], [0], [0], [1], [0, 0, 1, 1], [], []>} : vector<8x128xf32>, vector<128x128xf32>, vector<8x128xf32> -> vector<8x128xf32>
    %c0_17 = arith.constant 0 : index
    %c0_18 = arith.constant 0 : index
    %32 = vector.load %arg5[%c0_17, %c0_18] : memref<1x128xf32, #tpu.memory_space<vmem>>, vector<1x128xf32>
    %33 = vector.broadcast %32 : vector<1x128xf32> to vector<8x128xf32>
    %34 = arith.addf %31, %33 : vector<8x128xf32>
    %c0_19 = arith.constant 0 : index
    %c0_20 = arith.constant 0 : index
    %35 = vector.load %arg6[%c0_19, %c0_20] : memref<8x128xf32, #tpu.memory_space<vmem>>, vector<8x128xf32>
    tpu.vector_store %arg6[%c0_19, %c0_20], %34 {strides = array<i32>} : memref<8x128xf32, #tpu.memory_space<vmem>>, vector<8x128xf32>,
    return
  }
}

</mosaic_0001>

<llo_original>
// kernel: tpu_custom_call.1
$region0: #{tpu_custom_call.1}
  #allocation0 [shape = 'u32[]', space=smem, size = 0x4, offset = 0x4, fixed_abs, tag = 'smem constant byte address 0x4 - core index']
  #allocation1 [shape = 'u32[72,128]{1,0:T(1,128)}', space=vmem, size = 0x9000, scoped, tag = 'internal scratch']
  %s0 = inlined_call_operand.hbm [shape: f32[8,256], index: 0, kind: input, shape index: {}]
  %s1 = inlined_call_operand.hbm [shape: f32[256,128], index: 1, kind: input, shape index: {}]
  %s2 = inlined_call_operand.vmem [shape: f32[1,128], index: 2, kind: input, shape index: {}]
  %s3 = inlined_call_operand.vmem [shape: f32[1,128], index: 3, kind: input, shape index: {}]
  %s4 = inlined_call_operand.hbm [shape: f32[128,128], index: 4, kind: input, shape index: {}]
  %s5 = inlined_call_operand.vmem [shape: f32[1,128], index: 5, kind: input, shape index: {}]
  %s6 = inlined_call_operand.hbm [shape: f32[8,128], index: 6, kind: output, shape index: {}]
  %s7 = sld [smem:[#allocation0]]
  $region46: #{tpu_custom_call.1} parent=0
    _
  %s9 = ssub.s32 1, %s7
  %s10 = scalar_select 0, %s9, %s7
  $region1: #{tpu_custom_call.1} parent=0
    #allocation2 [shape = 'u8[8192]{0}', space=vmem, size = 0x2000, scoped, tag = 'input window, operand 0, single buffered']
    #allocation3 [shape = 's32[1]{0}', space=sflag, size = 0x4, scoped, tag = 'scoped memory for tpu_custom_call.1']
    #allocation4 [shape = 's32[1]{0}', space=sflag, size = 0x4, scoped, tag = 'scoped memory for tpu_custom_call.1']
    #allocation5 [shape = 'u8[131072]{0}', space=vmem, size = 0x20000, scoped, tag = 'input window, operand 1, single buffered']
    #allocation6 [shape = 's32[1]{0}', space=sflag, size = 0x4, scoped, tag = 'scoped memory for tpu_custom_call.1']
    #allocation7 [shape = 'u8[65536]{0}', space=vmem, size = 0x10000, scoped, tag = 'input window, operand 4, single buffered']
    #allocation8 [shape = 'u8[4096]{0}', space=vmem, size = 0x1000, scoped, tag = 'output window, operand 0, single buffered']
    %11 = vsyncpa [#allocation3], 0
    %12 = vsyncpa [#allocation6], 0
    %13 = vsyncpa [#allocation4], 0
    // Predicated region
    $region2: #{tpu_custom_call.1} parent=1 // pred_check
      _
    $region3: #{tpu_custom_call.1} parent=1 // pred_check_branch
      %15 = sbr.rel (0) target = $region5
    $region4: #{tpu_custom_call.1} parent=1 // pred_region
      %17 = vsyncadd [#allocation3], 0
      %s19 = sshll.u32 %s0, 4
      %s20 = int_to_ptr.hbm [resolvable:$true] %s19
      %s21 = sshll.u32 [#allocation2], 4
      %s22 = int_to_ptr.vmem [resolvable:$true] %s21
      %24 = dma.hbm_to_vmem [thread:$0]  %s20, 256, %s22, [#allocation3]
    $region5: #{tpu_custom_call.1} parent=1 // pred_fallthru
      _
    // Predicated region
    $region6: #{tpu_custom_call.1} parent=1 // pred_check
      _
    $region7: #{tpu_custom_call.1} parent=1 // pred_check_branch
      %26 = sbr.rel (0) target = $region9
    $region8: #{tpu_custom_call.1} parent=1 // pred_region
      %28 = vsyncadd [#allocation6], 0
      %s29 = sshll.u32 %s1, 4
      %s30 = int_to_ptr.hbm [resolvable:$true] %s29
      %s31 = sshll.u32 [#allocation5], 4
      %s32 = int_to_ptr.vmem [resolvable:$true] %s31
      %37 = dma.hbm_to_vmem [thread:$0]  %s30, 4096, %s32, [#allocation6], 128, 128, 8
    $region9: #{tpu_custom_call.1} parent=1 // pred_fallthru
      _
    // Predicated region
    $region10: #{tpu_custom_call.1} parent=1 // pred_check
      _
    $region11: #{tpu_custom_call.1} parent=1 // pred_check_branch
      %39 = sbr.rel (0) target = $region13
    $region12: #{tpu_custom_call.1} parent=1 // pred_region
      _
    $region13: #{tpu_custom_call.1} parent=1 // pred_fallthru
      _
    // Predicated region
    $region14: #{tpu_custom_call.1} parent=1 // pred_check
      _
    $region15: #{tpu_custom_call.1} parent=1 // pred_check_branch
      %41 = sbr.rel (0) target = $region17
    $region16: #{tpu_custom_call.1} parent=1 // pred_region
      _
    $region17: #{tpu_custom_call.1} parent=1 // pred_fallthru
      _
    // Predicated region
    $region18: #{tpu_custom_call.1} parent=1 // pred_check
      _
    $region19: #{tpu_custom_call.1} parent=1 // pred_check_branch
      %43 = sbr.rel (0) target = $region21
    $region20: #{tpu_custom_call.1} parent=1 // pred_region
      %45 = vsyncadd [#allocation6], 0
      %s46 = sshll.u32 %s4, 4
      %s47 = int_to_ptr.hbm [resolvable:$true] %s46
      %s48 = sshll.u32 [#allocation7], 4
      %s49 = int_to_ptr.vmem [resolvable:$true] %s48
      %54 = dma.hbm_to_vmem [thread:$0]  %s47, 2048, %s49, [#allocation6], 128, 128, 8
    $region21: #{tpu_custom_call.1} parent=1 // pred_fallthru
      _
    // Predicated region
    $region22: #{tpu_custom_call.1} parent=1 // pred_check
      _
    $region23: #{tpu_custom_call.1} parent=1 // pred_check_branch
      %56 = sbr.rel (0) target = $region25
    $region24: #{tpu_custom_call.1} parent=1 // pred_region
      _
    $region25: #{tpu_custom_call.1} parent=1 // pred_fallthru
      _
    // Predicated region
    $region26: #{tpu_custom_call.1} parent=1 // pred_check
      _
    $region27: #{tpu_custom_call.1} parent=1 // pred_check_branch
      %58 = sbr.rel (0) target = $region29
    $region28: #{tpu_custom_call.1} parent=1 // pred_region
      %60 = dma.done [#allocation3], 256
    $region29: #{tpu_custom_call.1} parent=1 // pred_fallthru
      _
    // Predicated region
    $region30: #{tpu_custom_call.1} parent=1 // pred_check
      _
    $region31: #{tpu_custom_call.1} parent=1 // pred_check_branch
      %62 = sbr.rel (0) target = $region33
    $region32: #{tpu_custom_call.1} parent=1 // pred_region
      %64 = dma.done [#allocation6], 4096
    $region33: #{tpu_custom_call.1} parent=1 // pred_fallthru
      _
    // Predicated region
    $region34: #{tpu_custom_call.1} parent=1 // pred_check
      _
    $region35: #{tpu_custom_call.1} parent=1 // pred_check_branch
      %66 = sbr.rel (0) target = $region37
    $region36: #{tpu_custom_call.1} parent=1 // pred_region
      %68 = dma.done [#allocation6], 2048
    $region37: #{tpu_custom_call.1} parent=1 // pred_fallthru
      _
    %v69 = vld [vmem:[#allocation2] sm:$0xff]
    %v70 = vld [vmem:[#allocation2 + $0x8] sm:$0xff]
    %v71 = vld [vmem:[#allocation5] sm:$0xff]
    %v72 = vld [vmem:[#allocation5 + $0x8] sm:$0xff]
    %v73 = vld [vmem:[#allocation5 + $0x10] sm:$0xff]
    %v74 = vld [vmem:[#allocation5 + $0x18] sm:$0xff]
    %v75 = vld [vmem:[#allocation5 + $0x20] sm:$0xff]
    %v76 = vld [vmem:[#allocation5 + $0x28] sm:$0xff]
    %v77 = vld [vmem:[#allocation5 + $0x30] sm:$0xff]
    %v78 = vld [vmem:[#allocation5 + $0x38] sm:$0xff]
    %v79 = vld [vmem:[#allocation5 + $0x40] sm:$0xff]
    %v80 = vld [vmem:[#allocation5 + $0x48] sm:$0xff]
    %v81 = vld [vmem:[#allocation5 + $0x50] sm:$0xff]
    %v82 = vld [vmem:[#allocation5 + $0x58] sm:$0xff]
    %v83 = vld [vmem:[#allocation5 + $0x60] sm:$0xff]
    %v84 = vld [vmem:[#allocation5 + $0x68] sm:$0xff]
    %v85 = vld [vmem:[#allocation5 + $0x70] sm:$0xff]
    %v86 = vld [vmem:[#allocation5 + $0x78] sm:$0xff]
    %v87 = vld [vmem:[#allocation5 + $0x80] sm:$0xff]
    %v88 = vld [vmem:[#allocation5 + $0x88] sm:$0xff]
    %v89 = vld [vmem:[#allocation5 + $0x90] sm:$0xff]
    %v90 = vld [vmem:[#allocation5 + $0x98] sm:$0xff]
    %v91 = vld [vmem:[#allocation5 + $0xa0] sm:$0xff]
    %v92 = vld [vmem:[#allocation5 + $0xa8] sm:$0xff]
    %v93 = vld [vmem:[#allocation5 + $0xb0] sm:$0xff]
    %v94 = vld [vmem:[#allocation5 + $0xb8] sm:$0xff]
    %v95 = vld [vmem:[#allocation5 + $0xc0] sm:$0xff]
    %v96 = vld [vmem:[#allocation5 + $0xc8] sm:$0xff]
    %v97 = vld [vmem:[#allocation5 + $0xd0] sm:$0xff]
    %v98 = vld [vmem:[#allocation5 + $0xd8] sm:$0xff]
    %v99 = vld [vmem:[#allocation5 + $0xe0] sm:$0xff]
    %v100 = vld [vmem:[#allocation5 + $0xe8] sm:$0xff]
    %v101 = vld [vmem:[#allocation5 + $0xf0] sm:$0xff]
    %v102 = vld [vmem:[#allocation5 + $0xf8] sm:$0xff]
    %103 = vmatpush.msra.mxu0 %v86
    %104 = vmatpush.msra.mxu0 %v85
    %105 = vmatpush.msra.mxu0 %v84
    %106 = vmatpush.msra.mxu0 %v83
    %107 = vmatpush.msra.mxu0 %v82
    %108 = vmatpush.msra.mxu0 %v81
    %109 = vmatpush.msra.mxu0 %v80
    %110 = vmatpush.msra.mxu0 %v79
    %111 = vmatpush.msra.mxu0 %v78
    %112 = vmatpush.msra.mxu0 %v77
    %113 = vmatpush.msra.mxu0 %v76
    %114 = vmatpush.msra.mxu0 %v75
    %115 = vmatpush.msra.mxu0 %v74
    %116 = vmatpush.msra.mxu0 %v73
    %117 = vmatpush.msra.mxu0 %v72
    %118 = vmatpush.msra.mxu0 %v71
    %119 = vmatmul.f32.gmra.mxu0 %v69
    %v120 = vpop.f32.mrf.mxu0
    %v121 = vadd.f32 0.0, %v120
    %122 = vdwg.mxu0
    %123 = vmatpush.msra.mxu0 %v102
    %124 = vmatpush.msra.mxu0 %v101
    %125 = vmatpush.msra.mxu0 %v100
    %126 = vmatpush.msra.mxu0 %v99
    %127 = vmatpush.msra.mxu0 %v98
    %128 = vmatpush.msra.mxu0 %v97
    %129 = vmatpush.msra.mxu0 %v96
    %130 = vmatpush.msra.mxu0 %v95
    %131 = vmatpush.msra.mxu0 %v94
    %132 = vmatpush.msra.mxu0 %v93
    %133 = vmatpush.msra.mxu0 %v92
    %134 = vmatpush.msra.mxu0 %v91
    %135 = vmatpush.msra.mxu0 %v90
    %136 = vmatpush.msra.mxu0 %v89
    %137 = vmatpush.msra.mxu0 %v88
    %138 = vmatpush.msra.mxu0 %v87
    %139 = vmatmul.f32.gmra.mxu0 %v70
    %v140 = vpop.f32.mrf.mxu0
    %v141 = vadd.f32 %v121, %v140
    %142 = vdwg.mxu0
    %v143 = vrot.slane %v141, 4
    %v144 = vadd.f32 %v141, %v143
    %v145 = vrot.slane %v144, 2
    %v146 = vadd.f32 %v144, %v145
    %v147 = vrot.slane %v146, 1
    %v148 = vadd.f32 %v146, %v147
    %v149 = vmul.f32 %v141, %v141
    %v150 = vrot.slane %v149, 4
    %v151 = vadd.f32 %v149, %v150
    %v152 = vrot.slane %v151, 2
    %v153 = vadd.f32 %v151, %v152
    %v154 = vrot.slane %v153, 1
    %v155 = vadd.f32 %v153, %v154
    %v156 = vmul.f32 %v148, 0.25
    %v157 = vmul.f32 %v155, 0.25
    %v158 = vmul.f32 %v156, %v156
    %v159 = vsub.f32 %v157, %v158
    %v160 = vmax.f32 %v159, 0.0
    %v161 = vld [vmem:[%s2] sm:$0x1]
    %v162 = vadd.f32 %v160, 1e-05
    %v163 = vrsqrt.pop %v162
    %v164 = vmul.f32 %v163, %v162
    %v165 = vmul.f32 %v164, %v163
    %v166 = vmul.f32 0.5, %v165
    %v167 = vsub.f32 1.5, %v166
    %v168 = vmul.f32 %v163, %v167
    %vm169 = vweird.f32 %v162
    %vm170 = vweird.f32 %v163
    %vm171 = vmor %vm169, %vm170
    %v172 = vsel %vm171, %v163, %v168
    %v173 = vmul.f32 %v161, %v172
    %v174 = vld [vmem:[%s3] sm:$0x1]
    %v175 = vmul.f32 %v156, %v173
    %v176 = vsub.f32 %v174, %v175
    %v178 = vperm.slane %v173, 0
    %v180 = vmul.f32 %v141, %v178
    %v182 = vperm.slane %v176, 0
    %v184 = vadd.f32 %v180, %v182
    %v185 = vmax.f32 %v184, 0.0
    %v186 = vld [vmem:[#allocation7] sm:$0xff]
    %v187 = vld [vmem:[#allocation7 + $0x8] sm:$0xff]
    %v188 = vld [vmem:[#allocation7 + $0x10] sm:$0xff]
    %v189 = vld [vmem:[#allocation7 + $0x18] sm:$0xff]
    %v190 = vld [vmem:[#allocation7 + $0x20] sm:$0xff]
    %v191 = vld [vmem:[#allocation7 + $0x28] sm:$0xff]
    %v192 = vld [vmem:[#allocation7 + $0x30] sm:$0xff]
    %v193 = vld [vmem:[#allocation7 + $0x38] sm:$0xff]
    %v194 = vld [vmem:[#allocation7 + $0x40] sm:$0xff]
    %v195 = vld [vmem:[#allocation7 + $0x48] sm:$0xff]
    %v196 = vld [vmem:[#allocation7 + $0x50] sm:$0xff]
    %v197 = vld [vmem:[#allocation7 + $0x58] sm:$0xff]
    %v198 = vld [vmem:[#allocation7 + $0x60] sm:$0xff]
    %v199 = vld [vmem:[#allocation7 + $0x68] sm:$0xff]
    %v200 = vld [vmem:[#allocation7 + $0x70] sm:$0xff]
    %v201 = vld [vmem:[#allocation7 + $0x78] sm:$0xff]
    %v202 = vld [vmem:[%s5] sm:$0x1]
    %v204 = vperm.slane %v202, 0
    %206 = vmatpush.msra.mxu0 %v201
    %207 = vmatpush.msra.mxu0 %v200
    %208 = vmatpush.msra.mxu0 %v199
    %209 = vmatpush.msra.mxu0 %v198
    %210 = vmatpush.msra.mxu0 %v197
    %211 = vmatpush.msra.mxu0 %v196
    %212 = vmatpush.msra.mxu0 %v195
    %213 = vmatpush.msra.mxu0 %v194
    %214 = vmatpush.msra.mxu0 %v193
    %215 = vmatpush.msra.mxu0 %v192
    %216 = vmatpush.msra.mxu0 %v191
    %217 = vmatpush.msra.mxu0 %v190
    %218 = vmatpush.msra.mxu0 %v189
    %219 = vmatpush.msra.mxu0 %v188
    %220 = vmatpush.msra.mxu0 %v187
    %221 = vmatpush.msra.mxu0 %v186
    %222 = vmatmul.f32.gmra.mxu0 %v185
    %v223 = vpop.f32.mrf.mxu0
    %v224 = vadd.f32 %v204, %v223
    %225 = vdwg.mxu0
    %226 = vst [vmem:[#allocation8] sm:$0xff] %v224
    // Predicated region
    $region38: #{tpu_custom_call.1} parent=1 // pred_check
      _
    $region39: #{tpu_custom_call.1} parent=1 // pred_check_branch
      %228 = sbr.rel (0) target = $region41
    $region40: #{tpu_custom_call.1} parent=1 // pred_region
      %230 = vsyncadd [#allocation4], 0
      %s232 = sshll.u32 [#allocation8], 4
      %s233 = int_to_ptr.vmem [resolvable:$true] %s232
      %s234 = sshll.u32 %s6, 4
      %s235 = int_to_ptr.hbm [resolvable:$true] %s234
      %237 = dma.vmem_to_hbm [thread:$0]  %s233, 128, %s235, [#allocation4]
    $region41: #{tpu_custom_call.1} parent=1 // pred_fallthru
      _
    // Predicated region
    $region42: #{tpu_custom_call.1} parent=1 // pred_check
      _
    $region43: #{tpu_custom_call.1} parent=1 // pred_check_branch
      %239 = sbr.rel (0) target = $region45
    $region44: #{tpu_custom_call.1} parent=1 // pred_region
      %241 = dma.done [#allocation4], 128
    $region45: #{tpu_custom_call.1} parent=1 // pred_fallthru
      _
    %242 = vsyncpa [#allocation3], 1
    %243 = vsyncpa [#allocation6], 1
    %244 = vsyncpa [#allocation4], 1

</llo_original>
